<compile_context>
chip_gen: v7x
topology: tpu7x:2x2x1
jax: 0.10.0
libtpu: 0.0.40
codegen_flags: <defaults>
</compile_context>

<pallas_src>
import functools
import math

import jax
import jax.numpy as jnp
from jax.experimental import pallas as pl
from jax.experimental.pallas import tpu as pltpu


def _round_up(x, m):
    return ((x + m - 1) // m) * m


def _sublanes(dtype):
    # Packed sublane group: 8 for 4-byte, 16 for 2-byte, 32 for 1-byte dtypes.
    return max(8, 32 // jnp.dtype(dtype).itemsize)


def _select_last_col_kernel(x_ref, o_ref, *, col):
    # x_ref: (TM, LW) lane window containing the last column of this row tile.
    # o_ref: (1, 1, TM) lane-dense output row for this tile.
    xt = jnp.transpose(x_ref[...], (1, 0))            # (LW, TM) via XLU
    o_ref[...] = xt[col:col + 1, :].reshape(o_ref.shape)


def _select_last_row_kernel(x_ref, o_ref, *, row):
    # x_ref: (SUB, TN) sublane window containing the last row of the input.
    # o_ref: (1, TN) lane-dense output tile.
    o_ref[...] = x_ref[row:row + 1, :]


def select_last_element(x, axis=-1):
    """Pallas equivalent of SelectLastElement.forward."""
    itemsize = jnp.dtype(x.dtype).itemsize
    sub = _sublanes(x.dtype)

    if axis == -1:
        out_shape = x.shape[:-1]
        n = x.shape[-1]
        m = int(math.prod(out_shape))
        x2d = x.reshape(m, n)

        tm = min(1024, _round_up(m, sub))          # rows per grid step
        grid_m = pl.cdiv(m, tm)
        lane_w = min(128, n)                       # lane window width (legal block)
        lane_block = (n - 1) // lane_w             # block holding column n-1
        col = (n - 1) % lane_w                     # column inside that block

        bytes_accessed = grid_m * tm * lane_w * itemsize + m * itemsize
        out3d = pl.pallas_call(
            functools.partial(_select_last_col_kernel, col=col),
            out_shape=jax.ShapeDtypeStruct((grid_m, 1, tm), x.dtype),
            grid=(grid_m,),
            in_specs=[pl.BlockSpec((tm, lane_w), lambda i: (i, lane_block))],
            out_specs=pl.BlockSpec((1, 1, tm), lambda i: (i, 0, 0)),
            compiler_params=pltpu.CompilerParams(
                dimension_semantics=("parallel",)),
            cost_estimate=pl.CostEstimate(
                flops=0, transcendentals=0, bytes_accessed=int(bytes_accessed)),
        )(x2d)

        flat = out3d.reshape(-1)
        if grid_m * tm != m:
            flat = flat[:m]
        return flat.reshape(out_shape)

    elif axis == 0:
        out_shape = x.shape[1:]
        n = x.shape[0]
        m = int(math.prod(out_shape))
        x2d = x.reshape(n, m)

        tn = min(8192, _round_up(m, 128))          # columns per grid step
        grid_n = pl.cdiv(m, tn)
        blk_h = min(sub, n)                        # sublane window height (legal block)
        row_block = (n - 1) // blk_h               # block holding row n-1
        row = (n - 1) % blk_h                      # row inside that block

        bytes_accessed = grid_n * blk_h * tn * itemsize + m * itemsize
        out2d = pl.pallas_call(
            functools.partial(_select_last_row_kernel, row=row),
            out_shape=jax.ShapeDtypeStruct((1, m), x.dtype),
            grid=(grid_n,),
            in_specs=[pl.BlockSpec((blk_h, tn), lambda j: (row_block, j))],
            out_specs=pl.BlockSpec((1, tn), lambda j: (0, j)),
            compiler_params=pltpu.CompilerParams(
                dimension_semantics=("parallel",)),
            cost_estimate=pl.CostEstimate(
                flops=0, transcendentals=0, bytes_accessed=int(bytes_accessed)),
        )(x2d)
        return out2d.reshape(out_shape)

    else:
        raise NotImplementedError


if __name__ == "__main__":
    key = jax.random.PRNGKey(0)
    # Small NCHW-like input: batch=2, channels=4, spatial=16x16
    x = jax.random.normal(key, (2, 4, 16, 16), dtype=jnp.float32)

    # axis=-1 (module default): x[..., -1] -> shape (2, 4, 16)
    out = select_last_element(x, axis=-1)
    out = jax.block_until_ready(out)
    ref = x[..., -1]
    assert out.shape == ref.shape, (out.shape, ref.shape)
    assert jnp.allclose(out, ref), "axis=-1 mismatch"

    # axis=0: x[-1] -> shape (4, 16, 16)
    out0 = select_last_element(x, axis=0)
    out0 = jax.block_until_ready(out0)
    ref0 = x[-1]
    assert out0.shape == ref0.shape, (out0.shape, ref0.shape)
    assert jnp.allclose(out0, ref0), "axis=0 mismatch"

    print("KERNEL_OK")
</pallas_src>

<mosaic_0001>
module attributes {stable_mosaic.version = 11 : i64} {
  func.func @_select_last_col_kernel(%arg0: i32, %arg1: memref<128x16xf32, #tpu.memory_space<vmem>>, %arg2: memref<1x1x128xf32, #tpu.memory_space<vmem>>) attributes {dimension_semantics = [#tpu.dimension_semantics<parallel>], iteration_bounds = array<i64: 1>, scalar_prefetch = 0 : i64, scratch_operands = 0 : i64, tpu.core_type = #tpu.core_type<tc>, window_params = [{transform_indices = @transform_0, window_bounds = array<i64: 128, 16>}, {transform_indices = @transform_1, window_bounds = array<i64: 1, 1, 128>}]} {
    %c0 = arith.constant 0 : index
    %c0_0 = arith.constant 0 : index
    %0 = vector.load %arg1[%c0, %c0_0] : memref<128x16xf32, #tpu.memory_space<vmem>>, vector<128x16xf32>
    %1 = tpu.transpose %0, [1, 0] : vector<128x16xf32> -> vector<16x128xf32>
    %2 = vector.extract_strided_slice %1 {offsets = [15, 0], sizes = [1, 128], strides = [1, 1]} : vector<16x128xf32> to vector<1x128xf32>
    %3 = vector.shape_cast %2 : vector<1x128xf32> to vector<1x1x128xf32>
    %c0_1 = arith.constant 0 : index
    %c0_2 = arith.constant 0 : index
    %c0_3 = arith.constant 0 : index
    %4 = vector.load %arg2[%c0_1, %c0_2, %c0_3] : memref<1x1x128xf32, #tpu.memory_space<vmem>>, vector<1x1x128xf32>
    tpu.vector_store %arg2[%c0_1, %c0_2, %c0_3], %3 {strides = array<i32>} : memref<1x1x128xf32, #tpu.memory_space<vmem>>, vector<1x1x128xf32>,
    return
  }
  func.func @transform_0(%arg0: i32) -> (i32, i32) {
    %c0_i32 = arith.constant 0 : i32
    %c0_i32_0 = arith.constant 0 : i32
    return %arg0, %c0_i32 : i32, i32
  }
  func.func @transform_1(%arg0: i32) -> (i32, i32, i32) {
    %c0_i32 = arith.constant 0 : i32
    %c0_i32_0 = arith.constant 0 : i32
    %c0_i32_1 = arith.constant 0 : i32
    return %arg0, %c0_i32, %c0_i32_0 : i32, i32, i32
  }
}

</mosaic_0001>

<llo_original>
// kernel: tpu_custom_call.1
$region0: #{tpu_custom_call.1}
  #allocation0 [shape = 'u32[]', space=smem, size = 0x4, offset = 0x4, fixed_abs, tag = 'smem constant byte address 0x4 - core index']
  #allocation1 [shape = 'u32[144,128]{1,0:T(1,128)}', space=vmem, size = 0x12000, scoped, tag = 'internal scratch']
  %s0 = inlined_call_operand.vmem [shape: f32[128,16], index: 0, kind: input, shape index: {}]
  %s1 = inlined_call_operand.hbm [shape: f32[1,1,128], index: 1, kind: output, shape index: {}]
  %s2 = sld [smem:[#allocation0]]
  $region14: #{tpu_custom_call.1} parent=0
    _
  %s4 = ssub.s32 1, %s2
  %s5 = scalar_select 0, %s4, %s2
  $region1: #{tpu_custom_call.1} parent=0
    #allocation2 [shape = 'u8[512]{0}', space=vmem, size = 0x400, scoped, tag = 'output window, operand 0, single buffered']
    #allocation3 [shape = 's32[1]{0}', space=sflag, size = 0x4, scoped, tag = 'scoped memory for tpu_custom_call.1']
    %6 = vsyncpa [#allocation3], 0
    // Predicated region
    $region2: #{tpu_custom_call.1} parent=1 // pred_check
      _
    $region3: #{tpu_custom_call.1} parent=1 // pred_check_branch
      %8 = sbr.rel (0) target = $region5
    $region4: #{tpu_custom_call.1} parent=1 // pred_region
      _
    $region5: #{tpu_custom_call.1} parent=1 // pred_fallthru
      _
    %v9 = vld [vmem:[%s0] sm:$0xff]
    %v10 = vld [vmem:[%s0 + $0x8] sm:$0xff]
    %v11 = vld [vmem:[%s0 + $0x10] sm:$0xff]
    %v12 = vld [vmem:[%s0 + $0x18] sm:$0xff]
    %v13 = vld [vmem:[%s0 + $0x20] sm:$0xff]
    %v14 = vld [vmem:[%s0 + $0x28] sm:$0xff]
    %v15 = vld [vmem:[%s0 + $0x30] sm:$0xff]
    %v16 = vld [vmem:[%s0 + $0x38] sm:$0xff]
    %v17 = vld [vmem:[%s0 + $0x40] sm:$0xff]
    %v18 = vld [vmem:[%s0 + $0x48] sm:$0xff]
    %v19 = vld [vmem:[%s0 + $0x50] sm:$0xff]
    %v20 = vld [vmem:[%s0 + $0x58] sm:$0xff]
    %v21 = vld [vmem:[%s0 + $0x60] sm:$0xff]
    %v22 = vld [vmem:[%s0 + $0x68] sm:$0xff]
    %v23 = vld [vmem:[%s0 + $0x70] sm:$0xff]
    %v24 = vld [vmem:[%s0 + $0x78] sm:$0xff]
    %25 = vxpose.xlu0.b32.start [1/16] %v9, 128
    %26 = vxpose.xlu0.b32.cont [2/16] %v10, 128
    %27 = vxpose.xlu0.b32.cont [3/16] %v11, 128
    %28 = vxpose.xlu0.b32.cont [4/16] %v12, 128
    %29 = vxpose.xlu0.b32.cont [5/16] %v13, 128
    %30 = vxpose.xlu0.b32.cont [6/16] %v14, 128
    %31 = vxpose.xlu0.b32.cont [7/16] %v15, 128
    %32 = vxpose.xlu0.b32.cont [8/16] %v16, 128
    %33 = vxpose.xlu0.b32.cont [9/16] %v17, 128
    %34 = vxpose.xlu0.b32.cont [10/16] %v18, 128
    %35 = vxpose.xlu0.b32.cont [11/16] %v19, 128
    %36 = vxpose.xlu0.b32.cont [12/16] %v20, 128
    %37 = vxpose.xlu0.b32.cont [13/16] %v21, 128
    %38 = vxpose.xlu0.b32.cont [14/16] %v22, 128
    %39 = vxpose.xlu0.b32.cont [15/16] %v23, 128
    %40 = vxpose.xlu0.b32.end [16/16] %v24, 128
    %v41 = vpop.trf.xlu0
    %v42 = vpop.trf.xlu0
    %v43 = vpop.trf.xlu0
    %v44 = vpop.trf.xlu0
    %v45 = vpop.trf.xlu0
    %v46 = vpop.trf.xlu0
    %v47 = vpop.trf.xlu0
    %v48 = vpop.trf.xlu0
    %v49 = vpop.trf.xlu0
    %v50 = vpop.trf.xlu0
    %v51 = vpop.trf.xlu0
    %v52 = vpop.trf.xlu0
    %v53 = vpop.trf.xlu0
    %v54 = vpop.trf.xlu0
    %v55 = vpop.trf.xlu0
    %v56 = vpop.trf.xlu0
    %57 = vst [vmem:[#allocation2 - $0x7] sm:$0x80] %v42
    // Predicated region
    $region6: #{tpu_custom_call.1} parent=1 // pred_check
      _
    $region7: #{tpu_custom_call.1} parent=1 // pred_check_branch
      %59 = sbr.rel (0) target = $region9
    $region8: #{tpu_custom_call.1} parent=1 // pred_region
      %s61 = ssub.s32 16, 16
      %62 = vsyncadd [#allocation3], %s61
      %s64 = sshll.u32 [#allocation2], 4
      %s65 = int_to_ptr.vmem [resolvable:$true] %s64
      %67 = dma.vmem_to_hbm [thread:$0]  %s65, 16, %s1, [#allocation3]
    $region9: #{tpu_custom_call.1} parent=1 // pred_fallthru
      _
    // Predicated region
    $region10: #{tpu_custom_call.1} parent=1 // pred_check
      _
    $region11: #{tpu_custom_call.1} parent=1 // pred_check_branch
      %69 = sbr.rel (0) target = $region13
    $region12: #{tpu_custom_call.1} parent=1 // pred_region
      %70 = dma.done [#allocation3], 16
    $region13: #{tpu_custom_call.1} parent=1 // pred_fallthru
      _
    %71 = vsyncpa [#allocation3], 1

</llo_original>
